<compile_context>
chip_gen: v7x
topology: tpu7x:2x2x1
jax: 0.10.0
libtpu: 0.0.40
codegen_flags: <defaults>
</compile_context>

<pallas_src>
import functools

import numpy as np
import jax
import jax.numpy as jnp
from jax.experimental import pallas as pl
from jax.experimental.pallas import tpu as pltpu

A_W = 0.8
B_W = 0.2
C_W = 0.1
GAMMA = 2
EPS = float(np.exp(-12))


def _multi_loss_kernel(l1_ref, l3_ref, l4_ref, tgt_ref, p_ref, bd_ref, out_ref,
                       *, inv_count):
    n = pl.program_id(0)
    t = pl.program_id(1)

    # ---- init resident scalar accumulator on the very first grid step ----
    @pl.when(jnp.logical_and(n == 0, t == 0))
    def _init():
        out_ref[0, 0] = jnp.float32(0.0)

    C = l1_ref.shape[1]
    tile = l1_ref.shape[2]

    # Shared across the three CE streams: target tile + one-hot via iota compare.
    tgt = tgt_ref[0]                                            # (1, TILE) int32
    cls = jax.lax.broadcasted_iota(jnp.int32, (C, tile), 0)     # (C, TILE)
    onehot = (cls == tgt).astype(jnp.float32)                   # (C, TILE)

    def ce_sum(l_ref):
        x = l_ref[0]                                  # (C, TILE) f32, lanes = spatial
        m = jnp.max(x, axis=0, keepdims=True)         # (1, TILE)
        lse = m + jnp.log(jnp.sum(jnp.exp(x - m), axis=0, keepdims=True))
        picked = jnp.sum(x * onehot, axis=0, keepdims=True)     # logit at target
        return jnp.sum(lse - picked)                  # scalar sum of NLL over tile

    nll1 = ce_sum(l1_ref)
    nll3 = ce_sum(l3_ref)
    nll4 = ce_sum(l4_ref)

    # Focal loss (gamma=2), elementwise on the lane-dense (1, TILE) maps.
    p = p_ref[0]                                      # (1, TILE) probabilities
    b = bd_ref[0]                                     # (1, TILE) binary targets
    one_m_p = 1.0 - p
    fl = (-b * (one_m_p * one_m_p) * jnp.log(p + EPS)
          - (1.0 - b) * (p * p) * jnp.log(one_m_p + EPS))
    fl_sum = jnp.sum(fl)

    # Weighted per-tile contribution; the common 1/P mean is applied once at the end.
    out_ref[0, 0] += A_W * nll1 + C_W * (nll3 + nll4) + B_W * fl_sum

    # ---- finalize: apply the mean normalization on the last grid step ----
    @pl.when(jnp.logical_and(n == pl.num_programs(0) - 1,
                             t == pl.num_programs(1) - 1))
    def _fin():
        out_ref[0, 0] = out_ref[0, 0] * inv_count


def _pick_tile(hw, max_tile=2048):
    """Largest multiple of 128 that divides hw (<= max_tile); fall back to full hw."""
    if hw % 128 != 0:
        return hw                      # full-extent lane dim is always legal
    best = 128
    t = 128
    while t <= min(hw, max_tile):
        if hw % t == 0:
            best = t
        t += 128
    return best


def multi_loss1(inputs1, target, inputs2, border, inputs3, inputs4):
    """inputs1/3/4: (N, C, H, W) f32 logits; target: (N, H, W) int class ids;
    inputs2/border: (N, 1, H, W) f32 (probability / binary maps)."""
    N, C, H, W = inputs1.shape
    HW = H * W
    P = N * HW
    tile = _pick_tile(HW)
    n_tiles = HW // tile

    # Pure reshapes — no transpose, no extra HBM copy; spatial dim goes on lanes.
    l1 = inputs1.reshape(N, C, HW).astype(jnp.float32)
    l3 = inputs3.reshape(N, C, HW).astype(jnp.float32)
    l4 = inputs4.reshape(N, C, HW).astype(jnp.float32)
    tgt = target.reshape(N, 1, HW).astype(jnp.int32)
    p2 = inputs2.reshape(N, 1, HW).astype(jnp.float32)
    bd = border.reshape(N, 1, HW).astype(jnp.float32)

    logits_spec = pl.BlockSpec((1, C, tile), lambda n, t: (n, 0, t))
    map_spec = pl.BlockSpec((1, 1, tile), lambda n, t: (n, 0, t))

    kernel = functools.partial(_multi_loss_kernel, inv_count=1.0 / float(P))

    out = pl.pallas_call(
        kernel,
        grid=(N, n_tiles),
        in_specs=[logits_spec, logits_spec, logits_spec,
                  map_spec, map_spec, map_spec],
        out_specs=pl.BlockSpec(memory_space=pltpu.MemorySpace.SMEM),
        out_shape=jax.ShapeDtypeStruct((1, 1), jnp.float32),
        compiler_params=pltpu.CompilerParams(
            dimension_semantics=("arbitrary", "arbitrary")),
    )(l1, l3, l4, tgt, p2, bd)
    return out[0, 0]


def _reference(inputs1, target, inputs2, border, inputs3, inputs4):
    def ce(logits, tgt):
        x = jnp.transpose(logits, (0, 2, 3, 1)).astype(jnp.float32)  # NHWC
        logp = jax.nn.log_softmax(x, axis=-1)
        nll = -jnp.take_along_axis(logp, tgt[..., None].astype(jnp.int32), axis=-1)
        return jnp.mean(nll)

    loss1 = ce(inputs1, target)
    p = inputs2.astype(jnp.float32)
    t = border.astype(jnp.float32)
    fl = -t * (1 - p) ** GAMMA * jnp.log(p + EPS) - (1 - t) * p ** GAMMA * jnp.log(1 - p + EPS)
    loss2 = jnp.mean(fl)
    loss3 = ce(inputs3, target) + ce(inputs4, target)
    return A_W * loss1 + B_W * loss2 + C_W * loss3


if __name__ == "__main__":
    key = jax.random.PRNGKey(0)
    k1, k2, k3, k4, k5, k6 = jax.random.split(key, 6)

    N, C, H, W = 2, 4, 16, 16
    inputs1 = jax.random.normal(k1, (N, C, H, W), jnp.float32)
    inputs3 = jax.random.normal(k2, (N, C, H, W), jnp.float32)
    inputs4 = jax.random.normal(k3, (N, C, H, W), jnp.float32)
    target = jax.random.randint(k4, (N, H, W), 0, C, jnp.int32)
    inputs2 = jax.nn.sigmoid(jax.random.normal(k5, (N, 1, H, W), jnp.float32))
    border = jax.random.bernoulli(k6, 0.3, (N, 1, H, W)).astype(jnp.float32)

    out = multi_loss1(inputs1, target, inputs2, border, inputs3, inputs4)
    out = jax.block_until_ready(out)

    ref = _reference(inputs1, target, inputs2, border, inputs3, inputs4)
    assert np.allclose(np.asarray(out), np.asarray(ref), rtol=1e-4, atol=1e-5), (out, ref)

    print("KERNEL_OK")
</pallas_src>

<mosaic_0001>
module attributes {stable_mosaic.version = 11 : i64} {
  func.func @_multi_loss_kernel(%arg0: i32, %arg1: i32, %arg2: memref<1x4x256xf32, #tpu.memory_space<vmem>>, %arg3: memref<1x4x256xf32, #tpu.memory_space<vmem>>, %arg4: memref<1x4x256xf32, #tpu.memory_space<vmem>>, %arg5: memref<1x1x256xi32, #tpu.memory_space<vmem>>, %arg6: memref<1x1x256xf32, #tpu.memory_space<vmem>>, %arg7: memref<1x1x256xf32, #tpu.memory_space<vmem>>, %arg8: memref<1x1xf32, #tpu.memory_space<smem>>) attributes {dimension_semantics = [#tpu.dimension_semantics<arbitrary>, #tpu.dimension_semantics<arbitrary>], iteration_bounds = array<i64: 2, 1>, scalar_prefetch = 0 : i64, scratch_operands = 0 : i64, tpu.core_type = #tpu.core_type<tc>, window_params = [{transform_indices = @transform_0, window_bounds = array<i64: 1, 4, 256>}, {transform_indices = @transform_1, window_bounds = array<i64: 1, 4, 256>}, {transform_indices = @transform_2, window_bounds = array<i64: 1, 4, 256>}, {transform_indices = @transform_3, window_bounds = array<i64: 1, 1, 256>}, {transform_indices = @transform_4, window_bounds = array<i64: 1, 1, 256>}, {transform_indices = @transform_5, window_bounds = array<i64: 1, 1, 256>}, {transform_indices = @transform_6, window_bounds = array<i64: 1, 1>}]} {
    %c0_i32 = arith.constant 0 : i32
    %0 = arith.cmpi eq, %arg0, %c0_i32 : i32
    %c0_i32_0 = arith.constant 0 : i32
    %1 = arith.cmpi eq, %arg1, %c0_i32_0 : i32
    %2 = arith.andi %0, %1 : i1
    %3 = arith.extui %2 : i1 to i32
    %c0_i32_1 = arith.constant 0 : i32
    %4 = arith.cmpi ne, %3, %c0_i32_1 : i32
    scf.if %4 {
      %cst_45 = arith.constant 0.000000e+00 : f32
      %c0_46 = arith.constant 0 : index
      %c0_47 = arith.constant 0 : index
      %110 = memref.load %arg8[%c0_46, %c0_47] : memref<1x1xf32, #tpu.memory_space<smem>>
      memref.store %cst_45, %arg8[%c0_46, %c0_47] : memref<1x1xf32, #tpu.memory_space<smem>>
    } else {
    }
    %c0 = arith.constant 0 : index
    %c0_2 = arith.constant 0 : index
    %c0_3 = arith.constant 0 : index
    %5 = vector.load %arg5[%c0, %c0_2, %c0_3] : memref<1x1x256xi32, #tpu.memory_space<vmem>>, vector<1x1x256xi32>
    %6 = vector.shape_cast %5 : vector<1x1x256xi32> to vector<1x256xi32>
    %7 = tpu.iota {dimensions = array<i32: 0>} : vector<4x256xi32>
    %8 = vector.broadcast %6 : vector<1x256xi32> to vector<4x256xi32>
    %9 = arith.cmpi eq, %7, %8 : vector<4x256xi32>
    %10 = arith.extui %9 : vector<4x256xi1> to vector<4x256xi32>
    %11 = arith.sitofp %10 : vector<4x256xi32> to vector<4x256xf32>
    %c0_4 = arith.constant 0 : index
    %c0_5 = arith.constant 0 : index
    %c0_6 = arith.constant 0 : index
    %12 = vector.load %arg2[%c0_4, %c0_5, %c0_6] : memref<1x4x256xf32, #tpu.memory_space<vmem>>, vector<1x4x256xf32>
    %13 = vector.shape_cast %12 : vector<1x4x256xf32> to vector<4x256xf32>
    %cst = arith.constant dense<0xFF800000> : vector<256xf32>
    %14 = vector.multi_reduction <maximumf>, %13, %cst [0] : vector<4x256xf32> to vector<256xf32>
    %15 = vector.shape_cast %14 : vector<256xf32> to vector<1x256xf32>
    %16 = vector.broadcast %15 : vector<1x256xf32> to vector<4x256xf32>
    %17 = arith.subf %13, %16 : vector<4x256xf32>
    %18 = math.exp %17 : vector<4x256xf32>
    %cst_7 = arith.constant dense<0.000000e+00> : vector<256xf32>
    %19 = vector.multi_reduction <add>, %18, %cst_7 [0] : vector<4x256xf32> to vector<256xf32>
    %20 = vector.shape_cast %19 : vector<256xf32> to vector<1x256xf32>
    %21 = math.log %20 : vector<1x256xf32>
    %22 = arith.addf %15, %21 : vector<1x256xf32>
    %23 = arith.mulf %13, %11 : vector<4x256xf32>
    %cst_8 = arith.constant dense<0.000000e+00> : vector<256xf32>
    %24 = vector.multi_reduction <add>, %23, %cst_8 [0] : vector<4x256xf32> to vector<256xf32>
    %25 = vector.shape_cast %24 : vector<256xf32> to vector<1x256xf32>
    %26 = arith.subf %22, %25 : vector<1x256xf32>
    %27 = vector.shape_cast %26 : vector<1x256xf32> to vector<1x1x256xf32>
    %cst_9 = arith.constant dense<0.000000e+00> : vector<1xf32>
    %28 = vector.multi_reduction <add>, %27, %cst_9 [1, 2] : vector<1x1x256xf32> to vector<1xf32>
    %29 = vector.shape_cast %28 : vector<1xf32> to vector<1x1x1xf32>
    %30 = vector.extract %29[0, 0, 0] : f32 from vector<1x1x1xf32>
    %c0_10 = arith.constant 0 : index
    %c0_11 = arith.constant 0 : index
    %c0_12 = arith.constant 0 : index
    %31 = vector.load %arg3[%c0_10, %c0_11, %c0_12] : memref<1x4x256xf32, #tpu.memory_space<vmem>>, vector<1x4x256xf32>
    %32 = vector.shape_cast %31 : vector<1x4x256xf32> to vector<4x256xf32>
    %cst_13 = arith.constant dense<0xFF800000> : vector<256xf32>
    %33 = vector.multi_reduction <maximumf>, %32, %cst_13 [0] : vector<4x256xf32> to vector<256xf32>
    %34 = vector.shape_cast %33 : vector<256xf32> to vector<1x256xf32>
    %35 = vector.broadcast %34 : vector<1x256xf32> to vector<4x256xf32>
    %36 = arith.subf %32, %35 : vector<4x256xf32>
    %37 = math.exp %36 : vector<4x256xf32>
    %cst_14 = arith.constant dense<0.000000e+00> : vector<256xf32>
    %38 = vector.multi_reduction <add>, %37, %cst_14 [0] : vector<4x256xf32> to vector<256xf32>
    %39 = vector.shape_cast %38 : vector<256xf32> to vector<1x256xf32>
    %40 = math.log %39 : vector<1x256xf32>
    %41 = arith.addf %34, %40 : vector<1x256xf32>
    %42 = arith.mulf %32, %11 : vector<4x256xf32>
    %cst_15 = arith.constant dense<0.000000e+00> : vector<256xf32>
    %43 = vector.multi_reduction <add>, %42, %cst_15 [0] : vector<4x256xf32> to vector<256xf32>
    %44 = vector.shape_cast %43 : vector<256xf32> to vector<1x256xf32>
    %45 = arith.subf %41, %44 : vector<1x256xf32>
    %46 = vector.shape_cast %45 : vector<1x256xf32> to vector<1x1x256xf32>
    %cst_16 = arith.constant dense<0.000000e+00> : vector<1xf32>
    %47 = vector.multi_reduction <add>, %46, %cst_16 [1, 2] : vector<1x1x256xf32> to vector<1xf32>
    %48 = vector.shape_cast %47 : vector<1xf32> to vector<1x1x1xf32>
    %49 = vector.extract %48[0, 0, 0] : f32 from vector<1x1x1xf32>
    %c0_17 = arith.constant 0 : index
    %c0_18 = arith.constant 0 : index
    %c0_19 = arith.constant 0 : index
    %50 = vector.load %arg4[%c0_17, %c0_18, %c0_19] : memref<1x4x256xf32, #tpu.memory_space<vmem>>, vector<1x4x256xf32>
    %51 = vector.shape_cast %50 : vector<1x4x256xf32> to vector<4x256xf32>
    %cst_20 = arith.constant dense<0xFF800000> : vector<256xf32>
    %52 = vector.multi_reduction <maximumf>, %51, %cst_20 [0] : vector<4x256xf32> to vector<256xf32>
    %53 = vector.shape_cast %52 : vector<256xf32> to vector<1x256xf32>
    %54 = vector.broadcast %53 : vector<1x256xf32> to vector<4x256xf32>
    %55 = arith.subf %51, %54 : vector<4x256xf32>
    %56 = math.exp %55 : vector<4x256xf32>
    %cst_21 = arith.constant dense<0.000000e+00> : vector<256xf32>
    %57 = vector.multi_reduction <add>, %56, %cst_21 [0] : vector<4x256xf32> to vector<256xf32>
    %58 = vector.shape_cast %57 : vector<256xf32> to vector<1x256xf32>
    %59 = math.log %58 : vector<1x256xf32>
    %60 = arith.addf %53, %59 : vector<1x256xf32>
    %61 = arith.mulf %51, %11 : vector<4x256xf32>
    %cst_22 = arith.constant dense<0.000000e+00> : vector<256xf32>
    %62 = vector.multi_reduction <add>, %61, %cst_22 [0] : vector<4x256xf32> to vector<256xf32>
    %63 = vector.shape_cast %62 : vector<256xf32> to vector<1x256xf32>
    %64 = arith.subf %60, %63 : vector<1x256xf32>
    %65 = vector.shape_cast %64 : vector<1x256xf32> to vector<1x1x256xf32>
    %cst_23 = arith.constant dense<0.000000e+00> : vector<1xf32>
    %66 = vector.multi_reduction <add>, %65, %cst_23 [1, 2] : vector<1x1x256xf32> to vector<1xf32>
    %67 = vector.shape_cast %66 : vector<1xf32> to vector<1x1x1xf32>
    %68 = vector.extract %67[0, 0, 0] : f32 from vector<1x1x1xf32>
    %c0_24 = arith.constant 0 : index
    %c0_25 = arith.constant 0 : index
    %c0_26 = arith.constant 0 : index
    %69 = vector.load %arg6[%c0_24, %c0_25, %c0_26] : memref<1x1x256xf32, #tpu.memory_space<vmem>>, vector<1x1x256xf32>
    %70 = vector.shape_cast %69 : vector<1x1x256xf32> to vector<1x256xf32>
    %c0_27 = arith.constant 0 : index
    %c0_28 = arith.constant 0 : index
    %c0_29 = arith.constant 0 : index
    %71 = vector.load %arg7[%c0_27, %c0_28, %c0_29] : memref<1x1x256xf32, #tpu.memory_space<vmem>>, vector<1x1x256xf32>
    %72 = vector.shape_cast %71 : vector<1x1x256xf32> to vector<1x256xf32>
    %cst_30 = arith.constant 1.000000e+00 : f32
    %73 = vector.broadcast %cst_30 : f32 to vector<1x256xf32>
    %74 = arith.subf %73, %70 : vector<1x256xf32>
    %cst_31 = arith.constant 0.000000e+00 : f32
    %75 = vector.broadcast %cst_31 : f32 to vector<1x256xf32>
    %76 = arith.subf %75, %72 : vector<1x256xf32>
    %77 = arith.mulf %74, %74 : vector<1x256xf32>
    %78 = arith.mulf %76, %77 : vector<1x256xf32>
    %cst_32 = arith.constant 6.14421242E-6 : f32
    %79 = vector.broadcast %cst_32 : f32 to vector<1x256xf32>
    %80 = arith.addf %70, %79 : vector<1x256xf32>
    %81 = math.log %80 : vector<1x256xf32>
    %82 = arith.mulf %78, %81 : vector<1x256xf32>
    %cst_33 = arith.constant 1.000000e+00 : f32
    %83 = vector.broadcast %cst_33 : f32 to vector<1x256xf32>
    %84 = arith.subf %83, %72 : vector<1x256xf32>
    %85 = arith.mulf %70, %70 : vector<1x256xf32>
    %86 = arith.mulf %84, %85 : vector<1x256xf32>
    %cst_34 = arith.constant 6.14421242E-6 : f32
    %87 = vector.broadcast %cst_34 : f32 to vector<1x256xf32>
    %88 = arith.addf %74, %87 : vector<1x256xf32>
    %89 = math.log %88 : vector<1x256xf32>
    %90 = arith.mulf %86, %89 : vector<1x256xf32>
    %91 = arith.subf %82, %90 : vector<1x256xf32>
    %92 = vector.shape_cast %91 : vector<1x256xf32> to vector<1x1x256xf32>
    %cst_35 = arith.constant dense<0.000000e+00> : vector<1xf32>
    %93 = vector.multi_reduction <add>, %92, %cst_35 [1, 2] : vector<1x1x256xf32> to vector<1xf32>
    %94 = vector.shape_cast %93 : vector<1xf32> to vector<1x1x1xf32>
    %95 = vector.extract %94[0, 0, 0] : f32 from vector<1x1x1xf32>
    %c0_36 = arith.constant 0 : index
    %c0_37 = arith.constant 0 : index
    %96 = memref.load %arg8[%c0_36, %c0_37] : memref<1x1xf32, #tpu.memory_space<smem>>
    %cst_38 = arith.constant 8.000000e-01 : f32
    %97 = arith.mulf %cst_38, %30 : f32
    %98 = arith.addf %49, %68 : f32
    %cst_39 = arith.constant 1.000000e-01 : f32
    %99 = arith.mulf %cst_39, %98 : f32
    %100 = arith.addf %97, %99 : f32
    %cst_40 = arith.constant 2.000000e-01 : f32
    %101 = arith.mulf %cst_40, %95 : f32
    %102 = arith.addf %100, %101 : f32
    %103 = arith.addf %96, %102 : f32
    %c0_41 = arith.constant 0 : index
    %c0_42 = arith.constant 0 : index
    %104 = memref.load %arg8[%c0_41, %c0_42] : memref<1x1xf32, #tpu.memory_space<smem>>
    memref.store %103, %arg8[%c0_41, %c0_42] : memref<1x1xf32, #tpu.memory_space<smem>>
    %c1_i32 = arith.constant 1 : i32
    %105 = arith.cmpi eq, %arg0, %c1_i32 : i32
    %c0_i32_43 = arith.constant 0 : i32
    %106 = arith.cmpi eq, %arg1, %c0_i32_43 : i32
    %107 = arith.andi %105, %106 : i1
    %108 = arith.extui %107 : i1 to i32
    %c0_i32_44 = arith.constant 0 : i32
    %109 = arith.cmpi ne, %108, %c0_i32_44 : i32
    scf.if %109 {
      %c0_45 = arith.constant 0 : index
      %c0_46 = arith.constant 0 : index
      %110 = memref.load %arg8[%c0_45, %c0_46] : memref<1x1xf32, #tpu.memory_space<smem>>
      %cst_47 = arith.constant 0.001953125 : f32
      %111 = arith.mulf %110, %cst_47 : f32
      %c0_48 = arith.constant 0 : index
      %c0_49 = arith.constant 0 : index
      %112 = memref.load %arg8[%c0_48, %c0_49] : memref<1x1xf32, #tpu.memory_space<smem>>
      memref.store %111, %arg8[%c0_48, %c0_49] : memref<1x1xf32, #tpu.memory_space<smem>>
    } else {
    }
    return
  }
  func.func @transform_0(%arg0: i32, %arg1: i32) -> (i32, i32, i32) {
    %c0_i32 = arith.constant 0 : i32
    %c0_i32_0 = arith.constant 0 : i32
    return %arg0, %c0_i32, %arg1 : i32, i32, i32
  }
  func.func @transform_1(%arg0: i32, %arg1: i32) -> (i32, i32, i32) {
    %c0_i32 = arith.constant 0 : i32
    %c0_i32_0 = arith.constant 0 : i32
    return %arg0, %c0_i32, %arg1 : i32, i32, i32
  }
  func.func @transform_2(%arg0: i32, %arg1: i32) -> (i32, i32, i32) {
    %c0_i32 = arith.constant 0 : i32
    %c0_i32_0 = arith.constant 0 : i32
    return %arg0, %c0_i32, %arg1 : i32, i32, i32
  }
  func.func @transform_3(%arg0: i32, %arg1: i32) -> (i32, i32, i32) {
    %c0_i32 = arith.constant 0 : i32
    %c0_i32_0 = arith.constant 0 : i32
    return %arg0, %c0_i32, %arg1 : i32, i32, i32
  }
  func.func @transform_4(%arg0: i32, %arg1: i32) -> (i32, i32, i32) {
    %c0_i32 = arith.constant 0 : i32
    %c0_i32_0 = arith.constant 0 : i32
    return %arg0, %c0_i32, %arg1 : i32, i32, i32
  }
  func.func @transform_5(%arg0: i32, %arg1: i32) -> (i32, i32, i32) {
    %c0_i32 = arith.constant 0 : i32
    %c0_i32_0 = arith.constant 0 : i32
    return %arg0, %c0_i32, %arg1 : i32, i32, i32
  }
  func.func @transform_6(%arg0: i32, %arg1: i32) -> (i32, i32) {
    %c0_i32 = arith.constant 0 : i32
    %c0_i32_0 = arith.constant 0 : i32
    %c0_i32_1 = arith.constant 0 : i32
    return %c0_i32, %c0_i32_0 : i32, i32
  }
}

</mosaic_0001>

<llo_original>
// kernel: tpu_custom_call.1
$region0: #{tpu_custom_call.1}
  #allocation0 [shape = 'u32[]', space=smem, size = 0x4, offset = 0x4, fixed_abs, tag = 'smem constant byte address 0x4 - core index']
  #allocation1 [shape = 'u32[144,128]{1,0:T(1,128)}', space=vmem, size = 0x12000, scoped, tag = 'internal scratch']
  %s0 = inlined_call_operand.hbm [shape: f32[2,4,256], index: 0, kind: input, shape index: {}]
  %s1 = inlined_call_operand.hbm [shape: f32[2,4,256], index: 1, kind: input, shape index: {}]
  %s2 = inlined_call_operand.hbm [shape: f32[2,4,256], index: 2, kind: input, shape index: {}]
  %s3 = inlined_call_operand.vmem [shape: s32[2,1,256], index: 3, kind: input, shape index: {}]
  %s4 = inlined_call_operand.vmem [shape: f32[2,1,256], index: 4, kind: input, shape index: {}]
  %s5 = inlined_call_operand.vmem [shape: f32[2,1,256], index: 5, kind: input, shape index: {}]
  %s6 = inlined_call_operand.hbm [shape: f32[1,1], index: 6, kind: output, shape index: {}]
  %s7 = sld [smem:[#allocation0]]
  $region77: #{tpu_custom_call.1} parent=0
    _
  %s9 = ssub.s32 1, %s7
  %s10 = scalar_select 0, %s9, %s7
  $region1: #{tpu_custom_call.1} parent=0
    #allocation2 [shape = 'u8[8192]{0}', space=vmem, size = 0x2000, scoped, tag = 'input window, operand 0']
    #allocation3 [shape = 's32[2]{0}', space=sflag, size = 0x8, scoped, tag = 'scoped memory for tpu_custom_call.1']
    #allocation4 [shape = 's32[2]{0}', space=sflag, size = 0x8, scoped, tag = 'scoped memory for tpu_custom_call.1']
    #allocation5 [shape = 'u8[8192]{0}', space=vmem, size = 0x2000, scoped, tag = 'input window, operand 1']
    #allocation6 [shape = 's32[2]{0}', space=sflag, size = 0x8, scoped, tag = 'scoped memory for tpu_custom_call.1']
    #allocation7 [shape = 'u8[8192]{0}', space=vmem, size = 0x2000, scoped, tag = 'input window, operand 2']
    #allocation8 [shape = 'u8[512]{0}', space=smem, size = 0x200, scoped, tag = 'output window, operand 0, single buffered']
    %11 = vsyncpa [#allocation3], 0
    %s12 = scalar_lea.sflag [#allocation3], 1
    %13 = vsyncpa %s12, 0
    %14 = vsyncpa [#allocation6], 0
    %s15 = scalar_lea.sflag [#allocation6], 1
    %16 = vsyncpa %s15, 0
    %17 = vsyncpa [#allocation4], 0
    loop: start=0, step=1, limit=4
    $region2: #{tpu_custom_call.1} parent=1 // loop_pre_header
      _
    $region3: #{tpu_custom_call.1} parent=1 // loop_header
      %s19 = sphi 0, %s23
      %p20 = scmp.ge.s32.totalorder %s19, 4
      %s26 = sphi 0, %s38
      %s27 = sphi 0, %s34
      %s28 = sphi 0, %s26
      %s29 = sphi 0, %s27
      %s30 = sphi 0, %s28
      %s31 = sphi 0, %s29
      %s43 = sphi 0, %s45
      %s46 = sphi 0, %s43
      %s47 = sphi 0, %s46
      %s63 = sphi 0, %s47
      %s71 = sphi 0, %s73
      %s74 = sphi 0, %s71
      %s75 = sphi 0, %s74
      %s91 = sphi 0, %s75
      %s99 = sphi 0, %s101
      %s102 = sphi 0, %s99
      %s103 = sphi 0, %s102
      %s119 = sphi 0, %s103
      %s127 = sphi 0, %s129
      %s130 = sphi 0, %s127
      %s131 = sphi 0, %s130
      %s147 = sphi 0, %s131
      %s155 = sphi 0, %s157
      %s158 = sphi 0, %s155
      %s159 = sphi 0, %s158
      %s175 = sphi 0, %s159
      %s183 = sphi 0, %s185
      %s186 = sphi 0, %s183
      %s187 = sphi 0, %s186
      %s203 = sphi 0, %s187
      %s207 = sphi 0, %s207
      %s209 = sphi 0, %s207
      %s210 = sphi 0, %s209
      %s224 = sphi 0, %s210
    $region4: #{tpu_custom_call.1} parent=1 // loop_header_branch
      %22 = sbr.rel (%p20) target = $region8
    $region5: #{tpu_custom_call.1} parent=1 // loop_body
      %s24 = ssub.s32 %s19, 1
      %s25 = ssub.s32 %s19, 2
      %s32 = sadd.s32 1, %s27
      %p33 = scmp.ge.s32.totalorder %s32, 1
      %s34 = scalar_select %p33, 0, %s32
      %s35 = sadd.s32 1, %s26
      %s36 = scalar_select %p33, %s35, %s26
      %p37 = scmp.ge.s32.totalorder %s36, 2
      %s38 = scalar_select %p37, 0, %s36
      %s39 = ssub.s32 %s26, %s38
      %s40 = ssub.s32 %s27, %s34
      %s41 = sor.u32 %s39, %s40
      %p42 = scmp.eq.s32.totalorder %s41, 0
      %s44 = sadd.s32 %s43, 1
      %s45 = scalar_select %p42, %s43, %s44
      %p48 = pneg %p42
      %p49 = scmp.eq.s32.totalorder %s19, 1
      %p50 = por %p48, %p49
      %p51 = scmp.ne.s32.totalorder %s43, %s46
      %p52 = scmp.eq.s32.totalorder %s19, 0
      %p53 = por %p51, %p52
      %p54 = scmp.ne.s32.totalorder %s43, %s46
      %p55 = scmp.eq.s32.totalorder %s24, 1
      %p56 = por %p54, %p55
      %p57 = scmp.ne.s32.totalorder %s46, %s47
      %p58 = scmp.eq.s32.totalorder %s24, 0
      %p59 = por %p57, %p58
      %p60 = scmp.ne.s32.totalorder %s46, %s47
      %p61 = scmp.eq.s32.totalorder %s25, 1
      %p62 = por %p60, %p61
      %p64 = scmp.ne.s32.totalorder %s47, %s63
      %p65 = scmp.eq.s32.totalorder %s25, 0
      %p66 = por %p64, %p65
      %s67 = ssub.s32 %s26, %s38
      %s68 = ssub.s32 %s27, %s34
      %s69 = sor.u32 %s67, %s68
      %p70 = scmp.eq.s32.totalorder %s69, 0
      %s72 = sadd.s32 %s71, 1
      %s73 = scalar_select %p70, %s71, %s72
      %p76 = pneg %p70
      %p77 = scmp.eq.s32.totalorder %s19, 1
      %p78 = por %p76, %p77
      %p79 = scmp.ne.s32.totalorder %s71, %s74
      %p80 = scmp.eq.s32.totalorder %s19, 0
      %p81 = por %p79, %p80
      %p82 = scmp.ne.s32.totalorder %s71, %s74
      %p83 = scmp.eq.s32.totalorder %s24, 1
      %p84 = por %p82, %p83
      %p85 = scmp.ne.s32.totalorder %s74, %s75
      %p86 = scmp.eq.s32.totalorder %s24, 0
      %p87 = por %p85, %p86
      %p88 = scmp.ne.s32.totalorder %s74, %s75
      %p89 = scmp.eq.s32.totalorder %s25, 1
      %p90 = por %p88, %p89
      %p92 = scmp.ne.s32.totalorder %s75, %s91
      %p93 = scmp.eq.s32.totalorder %s25, 0
      %p94 = por %p92, %p93
      %s95 = ssub.s32 %s26, %s38
      %s96 = ssub.s32 %s27, %s34
      %s97 = sor.u32 %s95, %s96
      %p98 = scmp.eq.s32.totalorder %s97, 0
      %s100 = sadd.s32 %s99, 1
      %s101 = scalar_select %p98, %s99, %s100
      %p104 = pneg %p98
      %p105 = scmp.eq.s32.totalorder %s19, 1
      %p106 = por %p104, %p105
      %p107 = scmp.ne.s32.totalorder %s99, %s102
      %p108 = scmp.eq.s32.totalorder %s19, 0
      %p109 = por %p107, %p108
      %p110 = scmp.ne.s32.totalorder %s99, %s102
      %p111 = scmp.eq.s32.totalorder %s24, 1
      %p112 = por %p110, %p111
      %p113 = scmp.ne.s32.totalorder %s102, %s103
      %p114 = scmp.eq.s32.totalorder %s24, 0
      %p115 = por %p113, %p114
      %p116 = scmp.ne.s32.totalorder %s102, %s103
      %p117 = scmp.eq.s32.totalorder %s25, 1
      %p118 = por %p116, %p117
      %p120 = scmp.ne.s32.totalorder %s103, %s119
      %p121 = scmp.eq.s32.totalorder %s25, 0
      %p122 = por %p120, %p121
      %s123 = ssub.s32 %s26, %s38
      %s124 = ssub.s32 %s27, %s34
      %s125 = sor.u32 %s123, %s124
      %p126 = scmp.eq.s32.totalorder %s125, 0
      %s128 = sadd.s32 %s127, 1
      %s129 = scalar_select %p126, %s127, %s128
      %p132 = pneg %p126
      %p133 = scmp.eq.s32.totalorder %s19, 1
      %p134 = por %p132, %p133
      %p135 = scmp.ne.s32.totalorder %s127, %s130
      %p136 = scmp.eq.s32.totalorder %s19, 0
      %p137 = por %p135, %p136
      %p138 = scmp.ne.s32.totalorder %s127, %s130
      %p139 = scmp.eq.s32.totalorder %s24, 1
      %p140 = por %p138, %p139
      %p141 = scmp.ne.s32.totalorder %s130, %s131
      %p142 = scmp.eq.s32.totalorder %s24, 0
      %p143 = por %p141, %p142
      %p144 = scmp.ne.s32.totalorder %s130, %s131
      %p145 = scmp.eq.s32.totalorder %s25, 1
      %p146 = por %p144, %p145
      %p148 = scmp.ne.s32.totalorder %s131, %s147
      %p149 = scmp.eq.s32.totalorder %s25, 0
      %p150 = por %p148, %p149
      %s151 = ssub.s32 %s26, %s38
      %s152 = ssub.s32 %s27, %s34
      %s153 = sor.u32 %s151, %s152
      %p154 = scmp.eq.s32.totalorder %s153, 0
      %s156 = sadd.s32 %s155, 1
      %s157 = scalar_select %p154, %s155, %s156
      %p160 = pneg %p154
      %p161 = scmp.eq.s32.totalorder %s19, 1
      %p162 = por %p160, %p161
      %p163 = scmp.ne.s32.totalorder %s155, %s158
      %p164 = scmp.eq.s32.totalorder %s19, 0
      %p165 = por %p163, %p164
      %p166 = scmp.ne.s32.totalorder %s155, %s158
      %p167 = scmp.eq.s32.totalorder %s24, 1
      %p168 = por %p166, %p167
      %p169 = scmp.ne.s32.totalorder %s158, %s159
      %p170 = scmp.eq.s32.totalorder %s24, 0
      %p171 = por %p169, %p170
      %p172 = scmp.ne.s32.totalorder %s158, %s159
      %p173 = scmp.eq.s32.totalorder %s25, 1
      %p174 = por %p172, %p173
      %p176 = scmp.ne.s32.totalorder %s159, %s175
      %p177 = scmp.eq.s32.totalorder %s25, 0
      %p178 = por %p176, %p177
      %s179 = ssub.s32 %s26, %s38
      %s180 = ssub.s32 %s27, %s34
      %s181 = sor.u32 %s179, %s180
      %p182 = scmp.eq.s32.totalorder %s181, 0
      %s184 = sadd.s32 %s183, 1
      %s185 = scalar_select %p182, %s183, %s184
      %p188 = pneg %p182
      %p189 = scmp.eq.s32.totalorder %s19, 1
      %p190 = por %p188, %p189
      %p191 = scmp.ne.s32.totalorder %s183, %s186
      %p192 = scmp.eq.s32.totalorder %s19, 0
      %p193 = por %p191, %p192
      %p194 = scmp.ne.s32.totalorder %s183, %s186
      %p195 = scmp.eq.s32.totalorder %s24, 1
      %p196 = por %p194, %p195
      %p197 = scmp.ne.s32.totalorder %s186, %s187
      %p198 = scmp.eq.s32.totalorder %s24, 0
      %p199 = por %p197, %p198
      %p200 = scmp.ne.s32.totalorder %s186, %s187
      %p201 = scmp.eq.s32.totalorder %s25, 1
      %p202 = por %p200, %p201
      %p204 = scmp.ne.s32.totalorder %s187, %s203
      %p205 = scmp.eq.s32.totalorder %s25, 0
      %p206 = por %p204, %p205
      %s208 = sadd.s32 %s207, 1
      %p211 = scmp.eq.s32.totalorder %s19, 1
      %p212 = scmp.ne.s32.totalorder %s207, %s209
      %p213 = scmp.eq.s32.totalorder %s19, 0
      %p214 = por %p212, %p213
      %p215 = scmp.ne.s32.totalorder %s207, %s209
      %p216 = scmp.eq.s32.totalorder %s24, 1
      %p217 = por %p215, %p216
      %p218 = scmp.ne.s32.totalorder %s209, %s210
      %p219 = scmp.eq.s32.totalorder %s24, 0
      %p220 = por %p218, %p219
      %p221 = scmp.ne.s32.totalorder %s209, %s210
      %p222 = scmp.eq.s32.totalorder %s25, 1
      %p223 = por %p221, %p222
      %p225 = scmp.ne.s32.totalorder %s210, %s224
      %p226 = scmp.eq.s32.totalorder %s25, 0
      %p227 = por %p225, %p226
      %p228 = scmp.le.s32.totalorder 1, %s19
      %p229 = scmp.lt.s32.totalorder %s19, 3
      %p230 = pnand %p228, %p229
      %p231 = pneg %p230
      // Predicated region
      $region9: #{tpu_custom_call.1} parent=5 // pred_check
        _
      $region10: #{tpu_custom_call.1} parent=5 // pred_check_branch
        %233 = sbr.rel (%p230) target = $region12
      $region11: #{tpu_custom_call.1} parent=5 // pred_region
        %s234 = ssub.s32 %s19, 1
      $region12: #{tpu_custom_call.1} parent=5 // pred_fallthru
        _
      %p235 = scmp.lt.s32.totalorder %s19, 2
      // Predicated region
      $region13: #{tpu_custom_call.1} parent=5 // pred_check
        %p236 = pneg %p235
      $region14: #{tpu_custom_call.1} parent=5 // pred_check_branch
        %238 = sbr.rel (%p236) target = $region16
      $region15: #{tpu_custom_call.1} parent=5 // pred_region
        // Predicated region
        $region17: #{tpu_custom_call.1} parent=15 // pred_check
          %p239 = pneg %p53
        $region18: #{tpu_custom_call.1} parent=15 // pred_check_branch
          %241 = sbr.rel (%p239) target = $region20
        $region19: #{tpu_custom_call.1} parent=15 // pred_region
          %s242 = sand.u32 %s43, 1
          %s243 = scalar_lea.sflag [#allocation3], %s242
          %s244 = sand.u32 %s43, 1
          %s245 = smul.addr %s244, 8
          %s246 = scalar_lea.vmem [#allocation2], %s245
          %s247 = smul.u32 2, %s27
          %s249 = ssub.s32 128, 128
          %250 = vsyncadd %s243, %s249
          %s251 = smul.addr %s26, 2
          %s252 = sadd.s32 %s247, %s251
          %s253 = smul.addr %s252, 64
          %s254 = scalar_lea.hbm %s0, %s253
          %s256 = sshll.u32 %s246, 4
          %s257 = int_to_ptr.vmem [resolvable:$true] %s256
          %259 = dma.hbm_to_vmem [thread:$0]  %s254, 128, %s257, %s243
        $region20: #{tpu_custom_call.1} parent=15 // pred_fallthru
          _
        // Predicated region
        $region21: #{tpu_custom_call.1} parent=15 // pred_check
          %p260 = pneg %p81
        $region22: #{tpu_custom_call.1} parent=15 // pred_check_branch
          %262 = sbr.rel (%p260) target = $region24
        $region23: #{tpu_custom_call.1} parent=15 // pred_region
          %s263 = sand.u32 %s19, 1
          %s264 = scalar_lea.sflag [#allocation6], %s263
          %s265 = sand.u32 %s71, 1
          %s266 = smul.addr %s265, 8
          %s267 = scalar_lea.vmem [#allocation5], %s266
          %s268 = smul.u32 2, %s27
          %s270 = ssub.s32 128, 128
          %271 = vsyncadd %s264, %s270
          %s272 = smul.addr %s26, 2
          %s273 = sadd.s32 %s268, %s272
          %s274 = smul.addr %s273, 64
          %s275 = scalar_lea.hbm %s1, %s274
          %s277 = sshll.u32 %s267, 4
          %s278 = int_to_ptr.vmem [resolvable:$true] %s277
          %280 = dma.hbm_to_vmem [thread:$0]  %s275, 128, %s278, %s264
        $region24: #{tpu_custom_call.1} parent=15 // pred_fallthru
          _
        // Predicated region
        $region25: #{tpu_custom_call.1} parent=15 // pred_check
          %p281 = pneg %p109
        $region26: #{tpu_custom_call.1} parent=15 // pred_check_branch
          %283 = sbr.rel (%p281) target = $region28
        $region27: #{tpu_custom_call.1} parent=15 // pred_region
          %s284 = sand.u32 %s19, 1
          %s285 = scalar_lea.sflag [#allocation6], %s284
          %s286 = sand.u32 %s99, 1
          %s287 = smul.addr %s286, 8
          %s288 = scalar_lea.vmem [#allocation7], %s287
          %s289 = smul.u32 2, %s27
          %s291 = ssub.s32 128, 128
          %292 = vsyncadd %s285, %s291
          %s293 = smul.addr %s26, 2
          %s294 = sadd.s32 %s289, %s293
          %s295 = smul.addr %s294, 64
          %s296 = scalar_lea.hbm %s2, %s295
          %s298 = sshll.u32 %s288, 4
          %s299 = int_to_ptr.vmem [resolvable:$true] %s298
          %301 = dma.hbm_to_vmem [thread:$0]  %s296, 128, %s299, %s285
        $region28: #{tpu_custom_call.1} parent=15 // pred_fallthru
          _
        // Predicated region
        $region29: #{tpu_custom_call.1} parent=15 // pred_check
          %p302 = pneg %p137
        $region30: #{tpu_custom_call.1} parent=15 // pred_check_branch
          %304 = sbr.rel (%p302) target = $region32
        $region31: #{tpu_custom_call.1} parent=15 // pred_region
          %s305 = smul.u32 2, %s27
          %p306 = scmp.lt.s32.totalorder %s26, 1
          %s307 = scalar_select %p306, %s26, 1
          %p308 = scmp.lt.s32.totalorder %s305, 1
          %s309 = scalar_select %p308, %s305, 1
          %s310 = smul.addr %s307, 2
          %s311 = sadd.s32 %s309, %s310
          %s312 = scalar_lea.vmem %s3, %s311
          %s313 = smul.u32 2, %s27
        $region32: #{tpu_custom_call.1} parent=15 // pred_fallthru
          _
        // Predicated region
        $region33: #{tpu_custom_call.1} parent=15 // pred_check
          %p314 = pneg %p165
        $region34: #{tpu_custom_call.1} parent=15 // pred_check_branch
          %316 = sbr.rel (%p314) target = $region36
        $region35: #{tpu_custom_call.1} parent=15 // pred_region
          %s317 = smul.u32 2, %s27
          %p318 = scmp.lt.s32.totalorder %s26, 1
          %s319 = scalar_select %p318, %s26, 1
          %p320 = scmp.lt.s32.totalorder %s317, 1
          %s321 = scalar_select %p320, %s317, 1
          %s322 = smul.addr %s319, 2
          %s323 = sadd.s32 %s321, %s322
          %s324 = scalar_lea.vmem %s4, %s323
          %s325 = smul.u32 2, %s27
        $region36: #{tpu_custom_call.1} parent=15 // pred_fallthru
          _
        // Predicated region
        $region37: #{tpu_custom_call.1} parent=15 // pred_check
          %p326 = pneg %p193
        $region38: #{tpu_custom_call.1} parent=15 // pred_check_branch
          %328 = sbr.rel (%p326) target = $region40
        $region39: #{tpu_custom_call.1} parent=15 // pred_region
          %s329 = smul.u32 2, %s27
          %p330 = scmp.lt.s32.totalorder %s26, 1
          %s331 = scalar_select %p330, %s26, 1
          %p332 = scmp.lt.s32.totalorder %s329, 1
          %s333 = scalar_select %p332, %s329, 1
          %s334 = smul.addr %s331, 2
          %s335 = sadd.s32 %s333, %s334
          %s336 = scalar_lea.vmem %s5, %s335
          %s337 = smul.u32 2, %s27
        $region40: #{tpu_custom_call.1} parent=15 // pred_fallthru
          _
      $region16: #{tpu_custom_call.1} parent=5 // pred_fallthru
        _
      %p338 = scmp.le.s32.totalorder 1, %s19
      %p339 = scmp.lt.s32.totalorder %s19, 3
      %p340 = pnand %p338, %p339
      %p341 = pneg %p340
      // Predicated region
      $region41: #{tpu_custom_call.1} parent=5 // pred_check
        _
      $region42: #{tpu_custom_call.1} parent=5 // pred_check_branch
        %343 = sbr.rel (%p340) target = $region44
      $region43: #{tpu_custom_call.1} parent=5 // pred_region
        %s344 = ssub.s32 %s19, 1
        %s345 = sand.u32 %s46, 1
        %s346 = scalar_lea.sflag [#allocation3], %s345
        %s347 = sand.u32 %s46, 1
        %s348 = smul.addr %s347, 8
        %s349 = scalar_lea.vmem [#allocation2], %s348
        // Predicated region
        $region45: #{tpu_custom_call.1} parent=43 // pred_check
          %p350 = pneg %p59
        $region46: #{tpu_custom_call.1} parent=43 // pred_check_branch
          %352 = sbr.rel (%p350) target = $region48
        $region47: #{tpu_custom_call.1} parent=43 // pred_region
          %353 = dma.done %s346, 128
        $region48: #{tpu_custom_call.1} parent=43 // pred_fallthru
          _
        %s354 = sand.u32 %s24, 1
        %s355 = scalar_lea.sflag [#allocation6], %s354
        %s356 = sand.u32 %s74, 1
        %s357 = smul.addr %s356, 8
        %s358 = scalar_lea.vmem [#allocation5], %s357
        // Predicated region
        $region49: #{tpu_custom_call.1} parent=43 // pred_check
          %p359 = pneg %p87
        $region50: #{tpu_custom_call.1} parent=43 // pred_check_branch
          %361 = sbr.rel (%p359) target = $region52
        $region51: #{tpu_custom_call.1} parent=43 // pred_region
          %362 = dma.done %s355, 128
        $region52: #{tpu_custom_call.1} parent=43 // pred_fallthru
          _
        %s363 = sand.u32 %s24, 1
        %s364 = scalar_lea.sflag [#allocation6], %s363
        %s365 = sand.u32 %s102, 1
        %s366 = smul.addr %s365, 8
        %s367 = scalar_lea.vmem [#allocation7], %s366
        // Predicated region
        $region53: #{tpu_custom_call.1} parent=43 // pred_check
          %p368 = pneg %p115
        $region54: #{tpu_custom_call.1} parent=43 // pred_check_branch
          %370 = sbr.rel (%p368) target = $region56
        $region55: #{tpu_custom_call.1} parent=43 // pred_region
          %371 = dma.done %s364, 128
        $region56: #{tpu_custom_call.1} parent=43 // pred_fallthru
          _
        %s372 = sand.u32 %s46, 1
        %s373 = scalar_lea.sflag [#allocation3], %s372
        %s374 = sand.u32 %s46, 1
        %s375 = smul.addr %s374, 8
        %s376 = scalar_lea.vmem [#allocation2], %s375
        %p377 = pneg %p59
        %p378 = pneg %p56
        %s379 = sand.u32 %s24, 1
        %s380 = scalar_lea.sflag [#allocation6], %s379
        %s381 = sand.u32 %s74, 1
        %s382 = smul.addr %s381, 8
        %s383 = scalar_lea.vmem [#allocation5], %s382
        %p384 = pneg %p87
        %p385 = pneg %p84
        %s386 = sand.u32 %s24, 1
        %s387 = scalar_lea.sflag [#allocation6], %s386
        %s388 = sand.u32 %s102, 1
        %s389 = smul.addr %s388, 8
        %s390 = scalar_lea.vmem [#allocation7], %s389
        %p391 = pneg %p115
        %p392 = pneg %p112
        %s393 = smul.u32 2, %s29
        %p394 = scmp.lt.s32.totalorder %s28, 1
        %s395 = scalar_select %p394, %s28, 1
        %p396 = scmp.lt.s32.totalorder %s393, 1
        %s397 = scalar_select %p396, %s393, 1
        %s398 = smul.addr %s395, 2
        %s399 = sadd.s32 %s397, %s398
        %s400 = scalar_lea.vmem %s3, %s399
        %p401 = pneg %p143
        %p402 = pneg %p140
        %s403 = smul.u32 2, %s29
        %p404 = scmp.lt.s32.totalorder %s28, 1
        %s405 = scalar_select %p404, %s28, 1
        %p406 = scmp.lt.s32.totalorder %s403, 1
        %s407 = scalar_select %p406, %s403, 1
        %s408 = smul.addr %s405, 2
        %s409 = sadd.s32 %s407, %s408
        %s410 = scalar_lea.vmem %s4, %s409
        %p411 = pneg %p171
        %p412 = pneg %p168
        %s413 = smul.u32 2, %s29
        %p414 = scmp.lt.s32.totalorder %s28, 1
        %s415 = scalar_select %p414, %s28, 1
        %p416 = scmp.lt.s32.totalorder %s413, 1
        %s417 = scalar_select %p416, %s413, 1
        %s418 = smul.addr %s415, 2
        %s419 = sadd.s32 %s417, %s418
        %s420 = scalar_lea.vmem %s5, %s419
        %p421 = pneg %p199
        %p422 = pneg %p196
        %p423 = pneg %p220
        %p424 = pneg %p217
        %s425 = smul.u32 2, %s29
        %s426 = smul.u32 2, %s29
        %s427 = smul.u32 2, %s29
        %s428 = smul.u32 2, %s29
        %p429 = scmp.lt.s32.totalorder %s28, 1
        %s430 = scalar_select %p429, %s28, 1
        %p431 = scmp.lt.s32.totalorder %s428, 1
        %s432 = scalar_select %p431, %s428, 1
        %s433 = smul.addr %s430, 2
        %s434 = sadd.s32 %s432, %s433
        %s435 = scalar_lea.vmem %s3, %s434
        %s436 = smul.u32 2, %s29
        %s437 = smul.u32 2, %s29
        %p438 = scmp.lt.s32.totalorder %s28, 1
        %s439 = scalar_select %p438, %s28, 1
        %p440 = scmp.lt.s32.totalorder %s437, 1
        %s441 = scalar_select %p440, %s437, 1
        %s442 = smul.addr %s439, 2
        %s443 = sadd.s32 %s441, %s442
        %s444 = scalar_lea.vmem %s4, %s443
        %s445 = smul.u32 2, %s29
        %s446 = smul.u32 2, %s29
        %p447 = scmp.lt.s32.totalorder %s28, 1
        %s448 = scalar_select %p447, %s28, 1
        %p449 = scmp.lt.s32.totalorder %s446, 1
        %s450 = scalar_select %p449, %s446, 1
        %s451 = smul.addr %s448, 2
        %s452 = sadd.s32 %s450, %s451
        %s453 = scalar_lea.vmem %s5, %s452
        %s454 = smul.u32 2, %s29
        %p455 = scmp.eq.s32.totalorder %s28, 0
        %p456 = scmp.eq.s32.totalorder %s29, 0
        %p457 = pnand %p455, %p456
        %p458 = pneg %p457
        // Predicated region
        $region57: #{tpu_custom_call.1} parent=43 // pred_check
          _
        $region58: #{tpu_custom_call.1} parent=43 // pred_check_branch
          %460 = sbr.rel (%p457) target = $region60
        $region59: #{tpu_custom_call.1} parent=43 // pred_region
          %s461 = scalar_lea.smem [#allocation8], 0
          %462 = sst [smem:[%s461]] 0.0
        $region60: #{tpu_custom_call.1} parent=43 // pred_fallthru
          _
        %v463 = vld [vmem:[%s435] sm:$0x3]
        %v464 = vlaneseq
        %v465 = vshrl.u32 %v464, 7
        %v466 = vlaneseq
        %v467 = vshrl.u32 %v466, 7
        %v468 = vsub.s32 0, %v467
        %v469 = vrot.slane %v463, %v468
        %v470 = vlaneseq
        %v471 = vshrl.u32 %v470, 7
        %v472 = vsub.s32 1, %v471
        %v473 = vrot.slane %v463, %v472
        %vm474 = vcmp.eq.s32.totalorder %v465, %v469
        %vm475 = vcmp.eq.s32.totalorder %v465, %v473
        %v476 = vsel %vm474, 1, 0
        %v477 = vsel %vm475, 1, 0
        %v478 = vcvt.s32.f32 %v476
        %v479 = vcvt.s32.f32 %v477
        %v480 = vld [vmem:[%s349] sm:$0xff]
        %v482 = vcombine.high %v480, %v480
        %vm484 = vcmask 1043456
        %v485 = vsel %vm484, %v480, -inf
        %v486 = vrot.slane %v485, 4
        %v487 = vmax.f32 %v485, %v486
        %v488 = vrot.slane %v487, 2
        %v489 = vmax.f32 %v487, %v488
        %v490 = vrot.slane %v489, 1
        %v491 = vmax.f32 %v489, %v490
        %v492 = vsel %vm484, %v482, -inf
        %v493 = vrot.slane %v492, 4
        %v494 = vmax.f32 %v492, %v493
        %v495 = vrot.slane %v494, 2
        %v496 = vmax.f32 %v494, %v495
        %v497 = vrot.slane %v496, 1
        %v498 = vmax.f32 %v496, %v497
        %v501 = vcombine.low %v491, %v498
        %v503 = vsub.f32 %v480, %v501
        %v504 = vmul.f32 %v503, 1.442695
        %v505 = vpow.pop %v504
        %v507 = vcombine.high %v505, %v505
        %v509 = vsel %vm484, %v505, 0.0
        %v510 = vrot.slane %v509, 4
        %v511 = vadd.f32 %v509, %v510
        %v512 = vrot.slane %v511, 2
        %v513 = vadd.f32 %v511, %v512
        %v514 = vrot.slane %v513, 1
        %v515 = vadd.f32 %v513, %v514
        %v516 = vsel %vm484, %v507, 0.0
        %v517 = vrot.slane %v516, 4
        %v518 = vadd.f32 %v516, %v517
        %v519 = vrot.slane %v518, 2
        %v520 = vadd.f32 %v518, %v519
        %v521 = vrot.slane %v520, 1
        %v522 = vadd.f32 %v520, %v521
        %v523 = vlog2.pop %v515
        %v524 = vmul.f32 %v523, 0.6931472
        %v525 = vlog2.pop %v522
        %v526 = vmul.f32 %v525, 0.6931472
        %v527 = vadd.f32 %v491, %v524
        %v528 = vadd.f32 %v498, %v526
        %v531 = vcombine.low %v478, %v479
        %v533 = vmul.f32 %v480, %v531
        %v535 = vcombine.high %v533, %v533
        %v537 = vsel %vm484, %v533, 0.0
        %v538 = vrot.slane %v537, 4
        %v539 = vadd.f32 %v537, %v538
        %v540 = vrot.slane %v539, 2
        %v541 = vadd.f32 %v539, %v540
        %v542 = vrot.slane %v541, 1
        %v543 = vadd.f32 %v541, %v542
        %v544 = vsel %vm484, %v535, 0.0
        %v545 = vrot.slane %v544, 4
        %v546 = vadd.f32 %v544, %v545
        %v547 = vrot.slane %v546, 2
        %v548 = vadd.f32 %v546, %v547
        %v549 = vrot.slane %v548, 1
        %v550 = vadd.f32 %v548, %v549
        %v551 = vsub.f32 %v527, %v543
        %v552 = vsub.f32 %v528, %v550
        %vm553 = vcmask 1040384
        %v554 = vsel %vm553, %v551, 0.0
        %v555 = vsel %vm553, %v552, 0.0
        %v556 = vadd.f32 %v554, %v555
        %557 = vadd.xlane.f32.xlu0 %v556
        %v558 = vpop.xlane.xlu0 %557
        %v559 = vrot.slane %v558, 4
        %v560 = vadd.f32 %v558, %v559
        %v561 = vrot.slane %v560, 2
        %v562 = vadd.f32 %v560, %v561
        %v563 = vrot.slane %v562, 1
        %v564 = vadd.f32 %v562, %v563
        %s565 = vtos %v564
        %v566 = vld [vmem:[%s358] sm:$0xff]
        %v568 = vcombine.high %v566, %v566
        %v570 = vsel %vm484, %v566, -inf
        %v571 = vrot.slane %v570, 4
        %v572 = vmax.f32 %v570, %v571
        %v573 = vrot.slane %v572, 2
        %v574 = vmax.f32 %v572, %v573
        %v575 = vrot.slane %v574, 1
        %v576 = vmax.f32 %v574, %v575
        %v577 = vsel %vm484, %v568, -inf
        %v578 = vrot.slane %v577, 4
        %v579 = vmax.f32 %v577, %v578
        %v580 = vrot.slane %v579, 2
        %v581 = vmax.f32 %v579, %v580
        %v582 = vrot.slane %v581, 1
        %v583 = vmax.f32 %v581, %v582
        %v586 = vcombine.low %v576, %v583
        %v588 = vsub.f32 %v566, %v586
        %v589 = vmul.f32 %v588, 1.442695
        %v590 = vpow.pop %v589
        %v592 = vcombine.high %v590, %v590
        %v594 = vsel %vm484, %v590, 0.0
        %v595 = vrot.slane %v594, 4
        %v596 = vadd.f32 %v594, %v595
        %v597 = vrot.slane %v596, 2
        %v598 = vadd.f32 %v596, %v597
        %v599 = vrot.slane %v598, 1
        %v600 = vadd.f32 %v598, %v599
        %v601 = vsel %vm484, %v592, 0.0
        %v602 = vrot.slane %v601, 4
        %v603 = vadd.f32 %v601, %v602
        %v604 = vrot.slane %v603, 2
        %v605 = vadd.f32 %v603, %v604
        %v606 = vrot.slane %v605, 1
        %v607 = vadd.f32 %v605, %v606
        %v608 = vlog2.pop %v600
        %v609 = vmul.f32 %v608, 0.6931472
        %v610 = vlog2.pop %v607
        %v611 = vmul.f32 %v610, 0.6931472
        %v612 = vadd.f32 %v576, %v609
        %v613 = vadd.f32 %v583, %v611
        %v614 = vmul.f32 %v566, %v531
        %v616 = vcombine.high %v614, %v614
        %v618 = vsel %vm484, %v614, 0.0
        %v619 = vrot.slane %v618, 4
        %v620 = vadd.f32 %v618, %v619
        %v621 = vrot.slane %v620, 2
        %v622 = vadd.f32 %v620, %v621
        %v623 = vrot.slane %v622, 1
        %v624 = vadd.f32 %v622, %v623
        %v625 = vsel %vm484, %v616, 0.0
        %v626 = vrot.slane %v625, 4
        %v627 = vadd.f32 %v625, %v626
        %v628 = vrot.slane %v627, 2
        %v629 = vadd.f32 %v627, %v628
        %v630 = vrot.slane %v629, 1
        %v631 = vadd.f32 %v629, %v630
        %v632 = vsub.f32 %v612, %v624
        %v633 = vsub.f32 %v613, %v631
        %v634 = vsel %vm553, %v632, 0.0
        %v635 = vsel %vm553, %v633, 0.0
        %v636 = vadd.f32 %v634, %v635
        %637 = vadd.xlane.f32.xlu0 %v636
        %v638 = vpop.xlane.xlu0 %637
        %v639 = vrot.slane %v638, 4
        %v640 = vadd.f32 %v638, %v639
        %v641 = vrot.slane %v640, 2
        %v642 = vadd.f32 %v640, %v641
        %v643 = vrot.slane %v642, 1
        %v644 = vadd.f32 %v642, %v643
        %s645 = vtos %v644
        %v646 = vld [vmem:[%s367] sm:$0xff]
        %v648 = vcombine.high %v646, %v646
        %v650 = vsel %vm484, %v646, -inf
        %v651 = vrot.slane %v650, 4
        %v652 = vmax.f32 %v650, %v651
        %v653 = vrot.slane %v652, 2
        %v654 = vmax.f32 %v652, %v653
        %v655 = vrot.slane %v654, 1
        %v656 = vmax.f32 %v654, %v655
        %v657 = vsel %vm484, %v648, -inf
        %v658 = vrot.slane %v657, 4
        %v659 = vmax.f32 %v657, %v658
        %v660 = vrot.slane %v659, 2
        %v661 = vmax.f32 %v659, %v660
        %v662 = vrot.slane %v661, 1
        %v663 = vmax.f32 %v661, %v662
        %v666 = vcombine.low %v656, %v663
        %v668 = vsub.f32 %v646, %v666
        %v669 = vmul.f32 %v668, 1.442695
        %v670 = vpow.pop %v669
        %v672 = vcombine.high %v670, %v670
        %v674 = vsel %vm484, %v670, 0.0
        %v675 = vrot.slane %v674, 4
        %v676 = vadd.f32 %v674, %v675
        %v677 = vrot.slane %v676, 2
        %v678 = vadd.f32 %v676, %v677
        %v679 = vrot.slane %v678, 1
        %v680 = vadd.f32 %v678, %v679
        %v681 = vsel %vm484, %v672, 0.0
        %v682 = vrot.slane %v681, 4
        %v683 = vadd.f32 %v681, %v682
        %v684 = vrot.slane %v683, 2
        %v685 = vadd.f32 %v683, %v684
        %v686 = vrot.slane %v685, 1
        %v687 = vadd.f32 %v685, %v686
        %v688 = vlog2.pop %v680
        %v689 = vmul.f32 %v688, 0.6931472
        %v690 = vlog2.pop %v687
        %v691 = vmul.f32 %v690, 0.6931472
        %v692 = vadd.f32 %v656, %v689
        %v693 = vadd.f32 %v663, %v691
        %v694 = vmul.f32 %v646, %v531
        %v696 = vcombine.high %v694, %v694
        %v698 = vsel %vm484, %v694, 0.0
        %v699 = vrot.slane %v698, 4
        %v700 = vadd.f32 %v698, %v699
        %v701 = vrot.slane %v700, 2
        %v702 = vadd.f32 %v700, %v701
        %v703 = vrot.slane %v702, 1
        %v704 = vadd.f32 %v702, %v703
        %v705 = vsel %vm484, %v696, 0.0
        %v706 = vrot.slane %v705, 4
        %v707 = vadd.f32 %v705, %v706
        %v708 = vrot.slane %v707, 2
        %v709 = vadd.f32 %v707, %v708
        %v710 = vrot.slane %v709, 1
        %v711 = vadd.f32 %v709, %v710
        %v712 = vsub.f32 %v692, %v704
        %v713 = vsub.f32 %v693, %v711
        %v714 = vsel %vm553, %v712, 0.0
        %v715 = vsel %vm553, %v713, 0.0
        %v716 = vadd.f32 %v714, %v715
        %717 = vadd.xlane.f32.xlu0 %v716
        %v718 = vpop.xlane.xlu0 %717
        %v719 = vrot.slane %v718, 4
        %v720 = vadd.f32 %v718, %v719
        %v721 = vrot.slane %v720, 2
        %v722 = vadd.f32 %v720, %v721
        %v723 = vrot.slane %v722, 1
        %v724 = vadd.f32 %v722, %v723
        %s725 = vtos %v724
        %v726 = vld [vmem:[%s444] sm:$0x3]
        %v727 = vld [vmem:[%s453] sm:$0x3]
        %v728 = vsub.f32 1.0, %v726
        %v729 = vsub.f32 0.0, %v727
        %v730 = vmul.f32 %v728, %v728
        %v731 = vmul.f32 %v729, %v730
        %v732 = vadd.f32 %v726, 6.1442124e-06
        %v733 = vlog2.pop %v732
        %v734 = vmul.f32 %v733, 0.6931472
        %v735 = vmul.f32 %v731, %v734
        %v736 = vsub.f32 1.0, %v727
        %v737 = vmul.f32 %v726, %v726
        %v738 = vmul.f32 %v736, %v737
        %v739 = vadd.f32 %v728, 6.1442124e-06
        %v740 = vlog2.pop %v739
        %v741 = vmul.f32 %v740, 0.6931472
        %v742 = vmul.f32 %v738, %v741
        %v743 = vsub.f32 %v735, %v742
        %v745 = vlaneseq
        %v746 = vshrl.u32 %v745, 7
        %v747 = vsub.s32 0, %v746
        %v748 = vrot.slane %v743, %v747
        %v749 = vlaneseq
        %v750 = vshrl.u32 %v749, 7
        %v751 = vsub.s32 1, %v750
        %v752 = vrot.slane %v743, %v751
        %v755 = vsel %vm553, %v748, 0.0
        %v756 = vsel %vm553, %v752, 0.0
        %v757 = vadd.f32 %v755, %v756
        %758 = vadd.xlane.f32.xlu0 %v757
        %v759 = vpop.xlane.xlu0 %758
        %v760 = vrot.slane %v759, 4
        %v761 = vadd.f32 %v759, %v760
        %v762 = vrot.slane %v761, 2
        %v763 = vadd.f32 %v761, %v762
        %v764 = vrot.slane %v763, 1
        %v765 = vadd.f32 %v763, %v764
        %s766 = vtos %v765
        %s767 = sld [smem:[#allocation8]]
        %s768 = smul.f32 %s565, 0.8
        %s769 = sadd.f32 %s645, %s725
        %s770 = smul.f32 %s769, 0.1
        %s771 = sadd.f32 %s768, %s770
        %s772 = smul.f32 %s766, 0.2
        %s773 = sadd.f32 %s771, %s772
        %s774 = sadd.f32 %s767, %s773
        %s775 = scalar_lea.smem [#allocation8], 0
        %776 = sst [smem:[%s775]] %s774
        %p777 = scmp.eq.s32.totalorder %s28, 1
        %p778 = pnand %p777, %p456
        %p779 = pneg %p778
        // Predicated region
        $region61: #{tpu_custom_call.1} parent=43 // pred_check
          _
        $region62: #{tpu_custom_call.1} parent=43 // pred_check_branch
          %781 = sbr.rel (%p778) target = $region64
        $region63: #{tpu_custom_call.1} parent=43 // pred_region
          %s782 = sld [smem:[#allocation8]]
          %s783 = smul.f32 %s782, 0.001953125
          %784 = sst [smem:[%s775]] %s783
        $region64: #{tpu_custom_call.1} parent=43 // pred_fallthru
          _
        // Predicated region
        $region65: #{tpu_custom_call.1} parent=43 // pred_check
          %p785 = pneg %p217
        $region66: #{tpu_custom_call.1} parent=43 // pred_check_branch
          %787 = sbr.rel (%p785) target = $region68
        $region67: #{tpu_custom_call.1} parent=43 // pred_region
          %s789 = ssub.s32 16, 16
          %790 = vsyncadd [#allocation4], %s789
          %793 = dma.smem_to_hbm [#allocation8], 16, %s6, [#allocation4]
        $region68: #{tpu_custom_call.1} parent=43 // pred_fallthru
          _
        // Predicated region
        $region69: #{tpu_custom_call.1} parent=43 // pred_check
          %p794 = pneg %p217
        $region70: #{tpu_custom_call.1} parent=43 // pred_check_branch
          %796 = sbr.rel (%p794) target = $region72
        $region71: #{tpu_custom_call.1} parent=43 // pred_region
          %797 = dma.done [#allocation4], 16
        $region72: #{tpu_custom_call.1} parent=43 // pred_fallthru
          _
        %798 = sfence
      $region44: #{tpu_custom_call.1} parent=5 // pred_fallthru
        _
      %p799 = scmp.le.s32.totalorder 2, %s19
      // Predicated region
      $region73: #{tpu_custom_call.1} parent=5 // pred_check
        %p800 = pneg %p799
      $region74: #{tpu_custom_call.1} parent=5 // pred_check_branch
        %802 = sbr.rel (%p800) target = $region76
      $region75: #{tpu_custom_call.1} parent=5 // pred_region
        %s803 = ssub.s32 %s19, 2
      $region76: #{tpu_custom_call.1} parent=5 // pred_fallthru
        _
    $region6: #{tpu_custom_call.1} parent=1 // loop_footer
      %s23 = sadd.s32 1, %s19
    $region7: #{tpu_custom_call.1} parent=1 // loop_footer_branch
      %18 = sbr.rel target = $region3
    $region8: #{tpu_custom_call.1} parent=1 // loop_exit
      _
    %804 = vsyncpa [#allocation3], 1
    %s805 = scalar_lea.sflag [#allocation3], 1
    %806 = vsyncpa %s805, 1
    %807 = vsyncpa [#allocation6], 1
    %s808 = scalar_lea.sflag [#allocation6], 1
    %809 = vsyncpa %s808, 1
    %810 = vsyncpa [#allocation4], 1
    %s811 = scalar_lea.sflag [#allocation4], 1
    %812 = vsyncpa %s811, 1

</llo_original>
